<compile_context>
chip_gen: v7x
topology: tpu7x:2x2x1
jax: 0.10.0
libtpu: 0.0.40
codegen_flags: <defaults>
</compile_context>

<pallas_src>
import functools

import jax
import jax.numpy as jnp
from jax.experimental import pallas as pl
from jax.experimental.pallas import tpu as pltpu


def _round_up(x, m):
    return (x + m - 1) // m * m


def _logsigmoid(x):
    # Numerically stable log(sigmoid(x)) = min(x, 0) - log1p(exp(-|x|))
    return jnp.minimum(x, 0.0) - jnp.log1p(jnp.exp(-jnp.abs(x)))


def _sgns_kernel(u_idx_ref, v_idx_ref,      # scalar prefetch: int32[R_pad] in SMEM
                 u_tbl, v_tbl,              # embedding tables, HBM (pl.ANY)
                 o_ref,                      # (1,1) f32 VMEM, resident accumulator/output
                 ubuf, vbuf,                 # (2, tile, D) VMEM gather double-buffers
                 usem, vsem,                 # DMA semaphores, shape (2,)
                 *, tile, n_pos, n_valid, pos_v_from_u):
    step = pl.program_id(0)
    nsteps = pl.num_programs(0)
    slot = step & 1

    def issue(blk, dst_slot):
        base = blk * tile

        @pl.loop(0, tile)
        def _(r):
            g = base + r
            iu = u_idx_ref[g]
            iv = v_idx_ref[g]
            pltpu.make_async_copy(u_tbl.at[iu], ubuf.at[dst_slot, r],
                                  usem.at[dst_slot]).start()
            if pos_v_from_u:
                # order == 1: positive v-rows come from the U table,
                # negative v-rows from the V table.
                @pl.when(g < n_pos)
                def _():
                    pltpu.make_async_copy(u_tbl.at[iv], vbuf.at[dst_slot, r],
                                          vsem.at[dst_slot]).start()

                @pl.when(g >= n_pos)
                def _():
                    pltpu.make_async_copy(v_tbl.at[iv], vbuf.at[dst_slot, r],
                                          vsem.at[dst_slot]).start()
            else:
                pltpu.make_async_copy(v_tbl.at[iv], vbuf.at[dst_slot, r],
                                      vsem.at[dst_slot]).start()

    def wait(dst_slot):
        @pl.loop(0, tile)
        def _(r):
            pltpu.make_async_copy(u_tbl.at[0], ubuf.at[dst_slot, r],
                                  usem.at[dst_slot]).wait()
            pltpu.make_async_copy(v_tbl.at[0], vbuf.at[dst_slot, r],
                                  vsem.at[dst_slot]).wait()

    @pl.when(step == 0)
    def _():
        o_ref[...] = jnp.zeros_like(o_ref)
        issue(0, 0)                       # prime the pipeline

    # Block `step` was issued at the previous grid step (or primed above).
    wait(slot)

    # Prefetch the next block while we compute on the current one.
    @pl.when(step + 1 < nsteps)
    def _():
        issue(step + 1, (step + 1) & 1)

    u = ubuf[slot]                        # (tile, D) f32
    v = vbuf[slot]                        # (tile, D) f32
    score = jnp.sum(u * v, axis=1, keepdims=True)          # (tile, 1)

    base = step * tile
    g_row = base + jax.lax.broadcasted_iota(jnp.int32, (tile, 1), 0)
    sign = jnp.where(g_row < n_pos, 1.0, -1.0).astype(jnp.float32)
    valid = (g_row < n_valid).astype(jnp.float32)

    contrib = valid * _logsigmoid(sign * score)             # (tile, 1)
    # loss = -(sum of log-sigmoid terms): accumulate the negated sum.
    o_ref[...] = o_ref[...] - jnp.sum(contrib, keepdims=True)


def _make_loss_call(emb_dim, r_pad, tile, n_pos, n_valid, pos_v_from_u, dtype):
    nsteps = r_pad // tile
    kernel = functools.partial(
        _sgns_kernel, tile=tile, n_pos=n_pos, n_valid=n_valid,
        pos_v_from_u=pos_v_from_u)

    grid_spec = pltpu.PrefetchScalarGridSpec(
        num_scalar_prefetch=2,
        grid=(nsteps,),
        in_specs=[pl.BlockSpec(memory_space=pl.ANY),    # u_embeddings (HBM)
                  pl.BlockSpec(memory_space=pl.ANY)],   # v_embeddings (HBM)
        out_specs=pl.BlockSpec((1, 1), lambda i, u_idx, v_idx: (0, 0)),
        scratch_shapes=[
            pltpu.VMEM((2, tile, emb_dim), dtype),      # u gather double-buffer
            pltpu.VMEM((2, tile, emb_dim), dtype),      # v gather double-buffer
            pltpu.SemaphoreType.DMA((2,)),
            pltpu.SemaphoreType.DMA((2,)),
        ],
    )

    cost = pl.CostEstimate(
        flops=2 * n_valid * emb_dim,
        transcendentals=2 * n_valid,
        bytes_accessed=2 * n_valid * emb_dim * 4 + 2 * r_pad * 4 + 4,
    )

    return pl.pallas_call(
        kernel,
        out_shape=jax.ShapeDtypeStruct((1, 1), jnp.float32),
        grid_spec=grid_spec,
        compiler_params=pltpu.CompilerParams(
            dimension_semantics=("arbitrary",)),
        cost_estimate=cost,
    )


@functools.partial(jax.jit, static_argnames=("order", "tile"))
def sgns_loss(u_table, v_table, pos_u, pos_v, neg_u, neg_v, *, order, tile=512):
    """Fused gather + skip-gram negative-sampling loss.  Returns scalar f32."""
    if order not in (1, 2):
        raise ValueError("order must be 1 or 2")
    n_pos = pos_u.shape[0]
    n_neg = neg_u.shape[0]
    n_valid = n_pos + n_neg
    emb_dim = u_table.shape[1]

    t = min(tile, _round_up(n_valid, 8))
    r_pad = _round_up(n_valid, t)

    u_idx = jnp.concatenate([pos_u, neg_u]).astype(jnp.int32)
    v_idx = jnp.concatenate([pos_v, neg_v]).astype(jnp.int32)
    pad = r_pad - n_valid
    if pad:
        zeros = jnp.zeros((pad,), jnp.int32)
        u_idx = jnp.concatenate([u_idx, zeros])
        v_idx = jnp.concatenate([v_idx, zeros])

    call = _make_loss_call(emb_dim, r_pad, t, n_pos, n_valid,
                           pos_v_from_u=(order == 1), dtype=u_table.dtype)
    out = call(u_idx, v_idx, u_table, v_table)
    return out[0, 0]


class NetModelPallas:
    """JAX/Pallas port of NetModel (skip-gram with negative sampling)."""

    def __init__(self, emb_size, emb_dimension, key):
        self.emb_size = emb_size
        self.emb_dimension = emb_dimension
        ku, kv = jax.random.split(key)
        bound = 0.5 / emb_size  # matches init_emb(): uniform_(-0.5/size, 0.5/size)
        self.u_embeddings = jax.random.uniform(
            ku, (emb_size, emb_dimension), jnp.float32, minval=-bound, maxval=bound)
        self.v_embeddings = jax.random.uniform(
            kv, (emb_size, emb_dimension), jnp.float32, minval=-bound, maxval=bound)

    def forward(self, pos_u, pos_v, neg_u, neg_v, order):
        return sgns_loss(self.u_embeddings, self.v_embeddings,
                         pos_u, pos_v, neg_u, neg_v, order=order)


def _reference_loss(u_table, v_table, pos_u, pos_v, neg_u, neg_v, order):
    # Pure-JAX reference reproducing the PyTorch forward exactly.
    emb_u = jnp.take(u_table, pos_u, axis=0)
    emb_v = jnp.take(u_table if order == 1 else v_table, pos_v, axis=0)
    neg_emb_u = jnp.take(u_table, neg_u, axis=0)
    neg_emb_v = jnp.take(v_table, neg_v, axis=0)
    score = jax.nn.log_sigmoid(jnp.sum(emb_u * emb_v, axis=1))
    neg_score = jax.nn.log_sigmoid(-jnp.sum(neg_emb_u * neg_emb_v, axis=1))
    return -(jnp.sum(score) + jnp.sum(neg_score))


if __name__ == "__main__":
    emb_size = 64        # vocabulary size
    emb_dimension = 128  # embedding dim (lane-aligned)
    batch = 8            # positive pairs
    n_neg = 16           # negative pairs

    key = jax.random.PRNGKey(0)
    k_model, k_pu, k_pv, k_nu, k_nv = jax.random.split(key, 5)

    model = NetModelPallas(emb_size, emb_dimension, k_model)

    pos_u = jax.random.randint(k_pu, (batch,), 0, emb_size, dtype=jnp.int32)
    pos_v = jax.random.randint(k_pv, (batch,), 0, emb_size, dtype=jnp.int32)
    neg_u = jax.random.randint(k_nu, (n_neg,), 0, emb_size, dtype=jnp.int32)
    neg_v = jax.random.randint(k_nv, (n_neg,), 0, emb_size, dtype=jnp.int32)

    # order == 2 (positive context from v_embeddings)
    loss2 = jax.block_until_ready(model.forward(pos_u, pos_v, neg_u, neg_v, order=2))
    ref2 = _reference_loss(model.u_embeddings, model.v_embeddings,
                           pos_u, pos_v, neg_u, neg_v, order=2)
    assert jnp.allclose(loss2, ref2, rtol=1e-5, atol=1e-5), (loss2, ref2)

    # order == 1 (positive context from u_embeddings)
    loss1 = jax.block_until_ready(model.forward(pos_u, pos_v, neg_u, neg_v, order=1))
    ref1 = _reference_loss(model.u_embeddings, model.v_embeddings,
                           pos_u, pos_v, neg_u, neg_v, order=1)
    assert jnp.allclose(loss1, ref1, rtol=1e-5, atol=1e-5), (loss1, ref1)

    print("KERNEL_OK")
</pallas_src>

<mosaic_0001>
module attributes {stable_mosaic.version = 11 : i64} {
  func.func @_sgns_kernel(%arg0: i32, %arg1: memref<24xi32, #tpu.memory_space<smem>>, %arg2: memref<24xi32, #tpu.memory_space<smem>>, %arg3: memref<64x128xf32, #tpu.memory_space<any>>, %arg4: memref<64x128xf32, #tpu.memory_space<any>>, %arg5: memref<1x1xf32, #tpu.memory_space<vmem>>, %arg6: memref<2x24x128xf32, #tpu.memory_space<vmem>>, %arg7: memref<2x24x128xf32, #tpu.memory_space<vmem>>, %arg8: memref<2x!tpu.dma_semaphore, #tpu.memory_space<semaphore_mem>>, %arg9: memref<2x!tpu.dma_semaphore, #tpu.memory_space<semaphore_mem>>) attributes {dimension_semantics = [#tpu.dimension_semantics<arbitrary>], iteration_bounds = array<i64: 1>, scalar_prefetch = 2 : i64, scratch_operands = 4 : i64, tpu.core_type = #tpu.core_type<tc>, window_params = [{}, {}, {pipeline_mode = #tpu.pipeline_mode<synchronous>, transform_indices = @transform_2, window_bounds = array<i64: 1, 1>}]} {
    %c1_i32 = arith.constant 1 : i32
    %0 = arith.andi %arg0, %c1_i32 : i32
    %c0_i32 = arith.constant 0 : i32
    %1 = arith.cmpi eq, %arg0, %c0_i32 : i32
    %2 = arith.extui %1 : i1 to i32
    %c0_i32_0 = arith.constant 0 : i32
    %3 = arith.cmpi ne, %2, %c0_i32_0 : i32
    scf.if %3 {
      %cst_21 = arith.constant 0.000000e+00 : f32
      %49 = vector.broadcast %cst_21 : f32 to vector<1x1xf32>
      %c0_22 = arith.constant 0 : index
      %c0_23 = arith.constant 0 : index
      %50 = vector.load %arg5[%c0_22, %c0_23] : memref<1x1xf32, #tpu.memory_space<vmem>>, vector<1x1xf32>
      tpu.vector_store %arg5[%c0_22, %c0_23], %49 {strides = array<i32>} : memref<1x1xf32, #tpu.memory_space<vmem>>, vector<1x1xf32>,
      %c0_i32_24 = arith.constant 0 : i32
      %c24_i32_25 = arith.constant 24 : i32
      %51 = arith.addi %c0_i32_24, %c24_i32_25 : i32
      %c1_i32_26 = arith.constant 1 : i32
      scf.for %arg10 = %c0_i32_24 to %51 step %c1_i32_26  : i32 {
        %c1_i32_28 = arith.constant 1 : i32
        %52 = arith.muli %arg10, %c1_i32_28 : i32
        %c0_i32_29 = arith.constant 0 : i32
        %53 = arith.addi %c0_i32_29, %52 : i32
        %c0_i32_30 = arith.constant 0 : i32
        %54 = arith.addi %c0_i32_30, %53 : i32
        %55 = arith.index_cast %54 : i32 to index
        %56 = memref.load %arg1[%55] : memref<24xi32, #tpu.memory_space<smem>>
        %57 = arith.index_cast %54 : i32 to index
        %58 = memref.load %arg2[%57] : memref<24xi32, #tpu.memory_space<smem>>
        %c0_i32_31 = arith.constant 0 : i32
        %c0_i32_32 = arith.constant 0 : i32
        %c0_i32_33 = arith.constant 0 : i32
        %59 = tpu.memref_slice %arg3[%56, %c0_i32_33] : memref<64x128xf32, #tpu.memory_space<any>> -> memref<1x128xf32, #tpu.memory_space<any>>
        %60 = tpu.memref_squeeze %59 : memref<1x128xf32, #tpu.memory_space<any>> -> memref<128xf32, #tpu.memory_space<any>>
        %c0_i32_34 = arith.constant 0 : i32
        %61 = tpu.memref_slice %arg6[%c0_i32_31, %53, %c0_i32_34] : memref<2x24x128xf32, #tpu.memory_space<vmem>> -> memref<1x1x128xf32, #tpu.memory_space<vmem>>
        %62 = tpu.memref_squeeze %61 : memref<1x1x128xf32, #tpu.memory_space<vmem>> -> memref<128xf32, #tpu.memory_space<vmem>>
        %63 = tpu.memref_slice %arg8[%c0_i32_32] : memref<2x!tpu.dma_semaphore, #tpu.memory_space<semaphore_mem>> -> memref<1x!tpu.dma_semaphore, #tpu.memory_space<semaphore_mem>>
        %64 = tpu.memref_squeeze %63 : memref<1x!tpu.dma_semaphore, #tpu.memory_space<semaphore_mem>> -> memref<!tpu.dma_semaphore, #tpu.memory_space<semaphore_mem>>
        tpu.enqueue_dma source(%60 : memref<128xf32, #tpu.memory_space<any>>) target(%62 : memref<128xf32, #tpu.memory_space<vmem>>) target_semaphore(%64 : memref<!tpu.dma_semaphore, #tpu.memory_space<semaphore_mem>>)
        %c0_i32_35 = arith.constant 0 : i32
        %c0_i32_36 = arith.constant 0 : i32
        %c0_i32_37 = arith.constant 0 : i32
        %65 = tpu.memref_slice %arg4[%58, %c0_i32_37] : memref<64x128xf32, #tpu.memory_space<any>> -> memref<1x128xf32, #tpu.memory_space<any>>
        %66 = tpu.memref_squeeze %65 : memref<1x128xf32, #tpu.memory_space<any>> -> memref<128xf32, #tpu.memory_space<any>>
        %c0_i32_38 = arith.constant 0 : i32
        %67 = tpu.memref_slice %arg7[%c0_i32_35, %53, %c0_i32_38] : memref<2x24x128xf32, #tpu.memory_space<vmem>> -> memref<1x1x128xf32, #tpu.memory_space<vmem>>
        %68 = tpu.memref_squeeze %67 : memref<1x1x128xf32, #tpu.memory_space<vmem>> -> memref<128xf32, #tpu.memory_space<vmem>>
        %69 = tpu.memref_slice %arg9[%c0_i32_36] : memref<2x!tpu.dma_semaphore, #tpu.memory_space<semaphore_mem>> -> memref<1x!tpu.dma_semaphore, #tpu.memory_space<semaphore_mem>>
        %70 = tpu.memref_squeeze %69 : memref<1x!tpu.dma_semaphore, #tpu.memory_space<semaphore_mem>> -> memref<!tpu.dma_semaphore, #tpu.memory_space<semaphore_mem>>
        tpu.enqueue_dma source(%66 : memref<128xf32, #tpu.memory_space<any>>) target(%68 : memref<128xf32, #tpu.memory_space<vmem>>) target_semaphore(%70 : memref<!tpu.dma_semaphore, #tpu.memory_space<semaphore_mem>>)
      }
      %c24_i32_27 = arith.constant 24 : i32
    } else {
    }
    %c0_i32_1 = arith.constant 0 : i32
    %c24_i32 = arith.constant 24 : i32
    %4 = arith.addi %c0_i32_1, %c24_i32 : i32
    %c1_i32_2 = arith.constant 1 : i32
    scf.for %arg10 = %c0_i32_1 to %4 step %c1_i32_2  : i32 {
      %c1_i32_21 = arith.constant 1 : i32
      %49 = arith.muli %arg10, %c1_i32_21 : i32
      %c0_i32_22 = arith.constant 0 : i32
      %50 = arith.addi %c0_i32_22, %49 : i32
      %c0_i32_23 = arith.constant 0 : i32
      %c0_i32_24 = arith.constant 0 : i32
      %51 = tpu.memref_slice %arg3[%c0_i32_23, %c0_i32_24] : memref<64x128xf32, #tpu.memory_space<any>> -> memref<1x128xf32, #tpu.memory_space<any>>
      %52 = tpu.memref_squeeze %51 : memref<1x128xf32, #tpu.memory_space<any>> -> memref<128xf32, #tpu.memory_space<any>>
      %c0_i32_25 = arith.constant 0 : i32
      %53 = tpu.memref_slice %arg6[%0, %50, %c0_i32_25] : memref<2x24x128xf32, #tpu.memory_space<vmem>> -> memref<1x1x128xf32, #tpu.memory_space<vmem>>
      %54 = tpu.memref_squeeze %53 : memref<1x1x128xf32, #tpu.memory_space<vmem>> -> memref<128xf32, #tpu.memory_space<vmem>>
      %55 = tpu.memref_slice %arg8[%0] : memref<2x!tpu.dma_semaphore, #tpu.memory_space<semaphore_mem>> -> memref<1x!tpu.dma_semaphore, #tpu.memory_space<semaphore_mem>>
      %56 = tpu.memref_squeeze %55 : memref<1x!tpu.dma_semaphore, #tpu.memory_space<semaphore_mem>> -> memref<!tpu.dma_semaphore, #tpu.memory_space<semaphore_mem>>
      tpu.wait_dma2 semaphore(%56 : memref<!tpu.dma_semaphore, #tpu.memory_space<semaphore_mem>>) src(%52 : memref<128xf32, #tpu.memory_space<any>>) dst(%54 : memref<128xf32, #tpu.memory_space<vmem>>)
      %c0_i32_26 = arith.constant 0 : i32
      %c0_i32_27 = arith.constant 0 : i32
      %57 = tpu.memref_slice %arg4[%c0_i32_26, %c0_i32_27] : memref<64x128xf32, #tpu.memory_space<any>> -> memref<1x128xf32, #tpu.memory_space<any>>
      %58 = tpu.memref_squeeze %57 : memref<1x128xf32, #tpu.memory_space<any>> -> memref<128xf32, #tpu.memory_space<any>>
      %c0_i32_28 = arith.constant 0 : i32
      %59 = tpu.memref_slice %arg7[%0, %50, %c0_i32_28] : memref<2x24x128xf32, #tpu.memory_space<vmem>> -> memref<1x1x128xf32, #tpu.memory_space<vmem>>
      %60 = tpu.memref_squeeze %59 : memref<1x1x128xf32, #tpu.memory_space<vmem>> -> memref<128xf32, #tpu.memory_space<vmem>>
      %61 = tpu.memref_slice %arg9[%0] : memref<2x!tpu.dma_semaphore, #tpu.memory_space<semaphore_mem>> -> memref<1x!tpu.dma_semaphore, #tpu.memory_space<semaphore_mem>>
      %62 = tpu.memref_squeeze %61 : memref<1x!tpu.dma_semaphore, #tpu.memory_space<semaphore_mem>> -> memref<!tpu.dma_semaphore, #tpu.memory_space<semaphore_mem>>
      tpu.wait_dma2 semaphore(%62 : memref<!tpu.dma_semaphore, #tpu.memory_space<semaphore_mem>>) src(%58 : memref<128xf32, #tpu.memory_space<any>>) dst(%60 : memref<128xf32, #tpu.memory_space<vmem>>)
    }
    %c24_i32_3 = arith.constant 24 : i32
    %c1_i32_4 = arith.constant 1 : i32
    %5 = arith.addi %arg0, %c1_i32_4 : i32
    %c1_i32_5 = arith.constant 1 : i32
    %6 = arith.cmpi slt, %5, %c1_i32_5 : i32
    %7 = arith.extui %6 : i1 to i32
    %c0_i32_6 = arith.constant 0 : i32
    %8 = arith.cmpi ne, %7, %c0_i32_6 : i32
    scf.if %8 {
      %c1_i32_21 = arith.constant 1 : i32
      %49 = arith.addi %arg0, %c1_i32_21 : i32
      %c1_i32_22 = arith.constant 1 : i32
      %50 = arith.addi %arg0, %c1_i32_22 : i32
      %c1_i32_23 = arith.constant 1 : i32
      %51 = arith.andi %50, %c1_i32_23 : i32
      %c24_i32_24 = arith.constant 24 : i32
      %52 = arith.muli %49, %c24_i32_24 : i32
      %c0_i32_25 = arith.constant 0 : i32
      %c24_i32_26 = arith.constant 24 : i32
      %53 = arith.addi %c0_i32_25, %c24_i32_26 : i32
      %c1_i32_27 = arith.constant 1 : i32
      scf.for %arg10 = %c0_i32_25 to %53 step %c1_i32_27  : i32 {
        %c1_i32_29 = arith.constant 1 : i32
        %54 = arith.muli %arg10, %c1_i32_29 : i32
        %c0_i32_30 = arith.constant 0 : i32
        %55 = arith.addi %c0_i32_30, %54 : i32
        %56 = arith.addi %52, %55 : i32
        %57 = arith.index_cast %56 : i32 to index
        %58 = memref.load %arg1[%57] : memref<24xi32, #tpu.memory_space<smem>>
        %59 = arith.index_cast %56 : i32 to index
        %60 = memref.load %arg2[%59] : memref<24xi32, #tpu.memory_space<smem>>
        %c0_i32_31 = arith.constant 0 : i32
        %61 = tpu.memref_slice %arg3[%58, %c0_i32_31] : memref<64x128xf32, #tpu.memory_space<any>> -> memref<1x128xf32, #tpu.memory_space<any>>
        %62 = tpu.memref_squeeze %61 : memref<1x128xf32, #tpu.memory_space<any>> -> memref<128xf32, #tpu.memory_space<any>>
        %c0_i32_32 = arith.constant 0 : i32
        %63 = tpu.memref_slice %arg6[%51, %55, %c0_i32_32] : memref<2x24x128xf32, #tpu.memory_space<vmem>> -> memref<1x1x128xf32, #tpu.memory_space<vmem>>
        %64 = tpu.memref_squeeze %63 : memref<1x1x128xf32, #tpu.memory_space<vmem>> -> memref<128xf32, #tpu.memory_space<vmem>>
        %65 = tpu.memref_slice %arg8[%51] : memref<2x!tpu.dma_semaphore, #tpu.memory_space<semaphore_mem>> -> memref<1x!tpu.dma_semaphore, #tpu.memory_space<semaphore_mem>>
        %66 = tpu.memref_squeeze %65 : memref<1x!tpu.dma_semaphore, #tpu.memory_space<semaphore_mem>> -> memref<!tpu.dma_semaphore, #tpu.memory_space<semaphore_mem>>
        tpu.enqueue_dma source(%62 : memref<128xf32, #tpu.memory_space<any>>) target(%64 : memref<128xf32, #tpu.memory_space<vmem>>) target_semaphore(%66 : memref<!tpu.dma_semaphore, #tpu.memory_space<semaphore_mem>>)
        %c0_i32_33 = arith.constant 0 : i32
        %67 = tpu.memref_slice %arg4[%60, %c0_i32_33] : memref<64x128xf32, #tpu.memory_space<any>> -> memref<1x128xf32, #tpu.memory_space<any>>
        %68 = tpu.memref_squeeze %67 : memref<1x128xf32, #tpu.memory_space<any>> -> memref<128xf32, #tpu.memory_space<any>>
        %c0_i32_34 = arith.constant 0 : i32
        %69 = tpu.memref_slice %arg7[%51, %55, %c0_i32_34] : memref<2x24x128xf32, #tpu.memory_space<vmem>> -> memref<1x1x128xf32, #tpu.memory_space<vmem>>
        %70 = tpu.memref_squeeze %69 : memref<1x1x128xf32, #tpu.memory_space<vmem>> -> memref<128xf32, #tpu.memory_space<vmem>>
        %71 = tpu.memref_slice %arg9[%51] : memref<2x!tpu.dma_semaphore, #tpu.memory_space<semaphore_mem>> -> memref<1x!tpu.dma_semaphore, #tpu.memory_space<semaphore_mem>>
        %72 = tpu.memref_squeeze %71 : memref<1x!tpu.dma_semaphore, #tpu.memory_space<semaphore_mem>> -> memref<!tpu.dma_semaphore, #tpu.memory_space<semaphore_mem>>
        tpu.enqueue_dma source(%68 : memref<128xf32, #tpu.memory_space<any>>) target(%70 : memref<128xf32, #tpu.memory_space<vmem>>) target_semaphore(%72 : memref<!tpu.dma_semaphore, #tpu.memory_space<semaphore_mem>>)
      }
      %c24_i32_28 = arith.constant 24 : i32
    } else {
    }
    %9 = arith.index_cast %0 : i32 to index
    %c0 = arith.constant 0 : index
    %c0_7 = arith.constant 0 : index
    %10 = vector.load %arg6[%9, %c0, %c0_7] : memref<2x24x128xf32, #tpu.memory_space<vmem>>, vector<1x24x128xf32>
    %11 = vector.shape_cast %10 : vector<1x24x128xf32> to vector<24x128xf32>
    %12 = arith.index_cast %0 : i32 to index
    %c0_8 = arith.constant 0 : index
    %c0_9 = arith.constant 0 : index
    %13 = vector.load %arg7[%12, %c0_8, %c0_9] : memref<2x24x128xf32, #tpu.memory_space<vmem>>, vector<1x24x128xf32>
    %14 = vector.shape_cast %13 : vector<1x24x128xf32> to vector<24x128xf32>
    %15 = arith.mulf %11, %14 : vector<24x128xf32>
    %cst = arith.constant dense<0.000000e+00> : vector<24xf32>
    %16 = vector.multi_reduction <add>, %15, %cst [1] : vector<24x128xf32> to vector<24xf32>
    %17 = vector.shape_cast %16 : vector<24xf32> to vector<24x1xf32>
    %c24_i32_10 = arith.constant 24 : i32
    %18 = arith.muli %arg0, %c24_i32_10 : i32
    %19 = tpu.iota {dimensions = array<i32: 0>} : vector<24x1xi32>
    %20 = vector.broadcast %18 : i32 to vector<24x1xi32>
    %21 = arith.addi %20, %19 : vector<24x1xi32>
    %c8_i32 = arith.constant 8 : i32
    %22 = vector.broadcast %c8_i32 : i32 to vector<24x1xi32>
    %23 = arith.cmpi slt, %21, %22 : vector<24x1xi32>
    %cst_11 = arith.constant 1.000000e+00 : f32
    %cst_12 = arith.constant -1.000000e+00 : f32
    %24 = vector.broadcast %cst_11 : f32 to vector<24x1xf32>
    %25 = vector.broadcast %cst_12 : f32 to vector<24x1xf32>
    %26 = arith.select %23, %24, %25 : vector<24x1xi1>, vector<24x1xf32>
    %c24_i32_13 = arith.constant 24 : i32
    %27 = vector.broadcast %c24_i32_13 : i32 to vector<24x1xi32>
    %28 = arith.cmpi slt, %21, %27 : vector<24x1xi32>
    %29 = arith.extui %28 : vector<24x1xi1> to vector<24x1xi32>
    %30 = arith.sitofp %29 : vector<24x1xi32> to vector<24x1xf32>
    %31 = arith.mulf %26, %17 : vector<24x1xf32>
    %cst_14 = arith.constant 0.000000e+00 : f32
    %32 = vector.broadcast %cst_14 : f32 to vector<24x1xf32>
    %33 = arith.minimumf %31, %32 : vector<24x1xf32>
    %34 = math.absf %31 : vector<24x1xf32>
    %cst_15 = arith.constant 0.000000e+00 : f32
    %35 = vector.broadcast %cst_15 : f32 to vector<24x1xf32>
    %36 = arith.subf %35, %34 : vector<24x1xf32>
    %37 = math.exp %36 : vector<24x1xf32>
    %38 = math.log1p %37 : vector<24x1xf32>
    %39 = arith.subf %33, %38 : vector<24x1xf32>
    %40 = arith.mulf %30, %39 : vector<24x1xf32>
    %c0_16 = arith.constant 0 : index
    %c0_17 = arith.constant 0 : index
    %41 = vector.load %arg5[%c0_16, %c0_17] : memref<1x1xf32, #tpu.memory_space<vmem>>, vector<1x1xf32>
    %42 = vector.shape_cast %40 : vector<24x1xf32> to vector<1x24x1xf32>
    %cst_18 = arith.constant dense<0.000000e+00> : vector<1xf32>
    %43 = vector.multi_reduction <add>, %42, %cst_18 [1, 2] : vector<1x24x1xf32> to vector<1xf32>
    %44 = vector.shape_cast %43 : vector<1xf32> to vector<1x1x1xf32>
    %45 = vector.extract %44[0, 0, 0] : f32 from vector<1x1x1xf32>
    %46 = vector.broadcast %45 : f32 to vector<1x1xf32>
    %47 = arith.subf %41, %46 : vector<1x1xf32>
    %c0_19 = arith.constant 0 : index
    %c0_20 = arith.constant 0 : index
    %48 = vector.load %arg5[%c0_19, %c0_20] : memref<1x1xf32, #tpu.memory_space<vmem>>, vector<1x1xf32>
    tpu.vector_store %arg5[%c0_19, %c0_20], %47 {strides = array<i32>} : memref<1x1xf32, #tpu.memory_space<vmem>>, vector<1x1xf32>,
    return
  }
  func.func @transform_2(%arg0: i32, %arg1: memref<24xi32, #tpu.memory_space<smem>>, %arg2: memref<24xi32, #tpu.memory_space<smem>>) -> (i32, i32) {
    %c0_i32 = arith.constant 0 : i32
    %c0_i32_0 = arith.constant 0 : i32
    %c0_i32_1 = arith.constant 0 : i32
    return %c0_i32, %c0_i32_0 : i32, i32
  }
}

</mosaic_0001>

<llo_original>
// kernel: sgns_loss.1
$region0: #{sgns_loss.1}
  #allocation0 [shape = 'u32[]', space=smem, size = 0x4, offset = 0x4, fixed_abs, tag = 'smem constant byte address 0x4 - core index']
  #allocation1 [shape = 'u32[144,128]{1,0:T(1,128)}', space=vmem, size = 0x12000, scoped, tag = 'internal scratch']
  #allocation2 [shape = 'f32[2,24,128]{2,1,0:T(8,128)}', space=vmem, size = 0x6000, scoped, tag = 'scratch operand']
  #allocation3 [shape = 'f32[2,24,128]{2,1,0:T(8,128)}', space=vmem, size = 0x6000, scoped, tag = 'scratch operand']
  #allocation4 [shape = 's32[2]{0}', space=sflag, size = 0x8, scoped, tag = 'scratch operand']
  #allocation5 [shape = 's32[2]{0}', space=sflag, size = 0x8, scoped, tag = 'scratch operand']
  #allocation6 [shape = 's32[1]{0}', space=sflag, size = 0x4, scoped, tag = 'scoped memory for sgns_loss.1']
  #allocation7 [shape = 'u8[512]{0}', space=smem, size = 0x200, scoped, tag = 'prefetched SMEM operand 0']
  #allocation8 [shape = 'u8[512]{0}', space=smem, size = 0x200, scoped, tag = 'prefetched SMEM operand 1']
  #allocation11 [shape = 's32[]', space=sflag, size = 0x4, offset = 0, fixed_abs, tag = 'sflag constant byte address 0x0 - dummy sync flag']
  #allocation12 [shape = 's32[]', space=sflag, size = 0x4, offset = 0, fixed_abs, tag = 'sflag constant byte address 0x0 - dummy sync flag']
  #allocation13 [shape = 'u32[]', space=smem, size = 0x4, offset = 0x44, fixed_abs, tag = 'smem constant byte address 0x44 - assertion arg 0']
  #allocation14 [shape = 'u32[]', space=smem, size = 0x4, offset = 0x48, fixed_abs, tag = 'smem constant byte address 0x48 - assertion arg 1']
  #allocation15 [shape = 's32[]', space=sflag, size = 0x4, offset = 0, fixed_abs, tag = 'sflag constant byte address 0x0 - dummy sync flag']
  #allocation16 [shape = 's32[]', space=sflag, size = 0x4, offset = 0, fixed_abs, tag = 'sflag constant byte address 0x0 - dummy sync flag']
  #allocation17 [shape = 's32[]', space=sflag, size = 0x4, offset = 0, fixed_abs, tag = 'sflag constant byte address 0x0 - dummy sync flag']
  #allocation18 [shape = 's32[]', space=sflag, size = 0x4, offset = 0, fixed_abs, tag = 'sflag constant byte address 0x0 - dummy sync flag']
  #allocation19 [shape = 's32[]', space=sflag, size = 0x4, offset = 0, fixed_abs, tag = 'sflag constant byte address 0x0 - dummy sync flag']
  #allocation20 [shape = 's32[]', space=sflag, size = 0x4, offset = 0, fixed_abs, tag = 'sflag constant byte address 0x0 - dummy sync flag']
  %s0 = inlined_call_operand.vmem [shape: s32[24], index: 0, kind: input, shape index: {}]
  %s1 = inlined_call_operand.vmem [shape: s32[24], index: 1, kind: input, shape index: {}]
  %s2 = inlined_call_operand.hbm [shape: f32[64,128], index: 2, kind: input, shape index: {}]
  %s3 = inlined_call_operand.hbm [shape: f32[64,128], index: 3, kind: input, shape index: {}]
  %s4 = inlined_call_operand.hbm [shape: f32[1,1], index: 4, kind: output, shape index: {}]
  %s5 = sld [smem:[#allocation0]]
  $region55: #{sgns_loss.1} parent=0
    _
  %s7 = ssub.s32 1, %s5
  %s8 = scalar_select 0, %s7, %s5
  %s9 = sshll.u32 %s0, 4
  %s10 = int_to_ptr.vmem [resolvable:$true] %s9
  %12 = dma.vmem_to_smem %s10, 16, [#allocation7], [#allocation6]
  %s13 = sshll.u32 %s1, 4
  %s14 = int_to_ptr.vmem [resolvable:$true] %s13
  %16 = dma.vmem_to_smem %s14, 16, [#allocation8], [#allocation6]
  %17 = dma.done [#allocation6], 32
  %18 = sfence
  $region1: #{sgns_loss.1} parent=0
    #allocation9 [shape = 'u8[512]{0}', space=vmem, size = 0x400, scoped, tag = 'output window, operand 0, single buffered']
    #allocation10 [shape = 's32[1]{0}', space=sflag, size = 0x4, scoped, tag = 'scoped memory for sgns_loss.1']
    %19 = vsyncpa [#allocation10], 0
    %s20 = sand.u32 0, 1
    %p21 = scmp.eq.s32.totalorder 0, 0
    // Predicated region
    $region2: #{sgns_loss.1} parent=1 // pred_check
      %p22 = pneg %p21
    $region3: #{sgns_loss.1} parent=1 // pred_check_branch
      %24 = sbr.rel (%p22) target = $region5
    $region4: #{sgns_loss.1} parent=1 // pred_region
      %vm25 = vcmask 0
      %26 = vst.msk [vmem:[#allocation9] sm:$0x1] %vm25, 0.0
      loop: start=0, step=1, limit=24
      $region6: #{sgns_loss.1} parent=4 // loop_pre_header
        _
      $region7: #{sgns_loss.1} parent=4 // loop_header
        %s28 = sphi 0, %s32
        %p29 = scmp.ge.s32.totalorder %s28, 24
      $region8: #{sgns_loss.1} parent=4 // loop_header_branch
        %31 = sbr.rel (%p29) target = $region12
      $region9: #{sgns_loss.1} parent=4 // loop_body
        %s33 = sld [smem:[#allocation7 + %s28]]
        %s34 = sld [smem:[#allocation8 + %s28]]
        %s35 = smul.addr %s33, 16
        %s36 = scalar_lea.hbm %s2, %s35
        %s37 = scalar_lea.vmem [#allocation2], %s28
        // Predicated region
        $region13: #{sgns_loss.1} parent=9 // pred_check
          _
        $region14: #{sgns_loss.1} parent=9 // pred_check_branch
          %39 = sbr.rel target = $region16
        $region15: #{sgns_loss.1} parent=9 // pred_region
          %40 = sst [smem:[#allocation13]] [#allocation12]
          %41 = sst [smem:[#allocation14]] [#allocation11]
        $region16: #{sgns_loss.1} parent=9 // pred_fallthru
          _
        %43 = shalt.err (0)
        %s45 = sshll.u32 %s37, 4
        %s46 = int_to_ptr.vmem [resolvable:$true] %s45
        %48 = dma.hbm_to_vmem [thread:$0]  %s36, 16, %s46, [#allocation4]
        %s49 = smul.addr %s34, 16
        %s50 = scalar_lea.hbm %s3, %s49
        %s51 = scalar_lea.vmem [#allocation3], %s28
        // Predicated region
        $region17: #{sgns_loss.1} parent=9 // pred_check
          _
        $region18: #{sgns_loss.1} parent=9 // pred_check_branch
          %53 = sbr.rel target = $region20
        $region19: #{sgns_loss.1} parent=9 // pred_region
          %54 = sst [smem:[#allocation13]] [#allocation16]
          %55 = sst [smem:[#allocation14]] [#allocation15]
        $region20: #{sgns_loss.1} parent=9 // pred_fallthru
          _
        %57 = shalt.err (0)
        %s59 = sshll.u32 %s51, 4
        %s60 = int_to_ptr.vmem [resolvable:$true] %s59
        %62 = dma.hbm_to_vmem [thread:$0]  %s50, 16, %s60, [#allocation5]
      $region10: #{sgns_loss.1} parent=4 // loop_footer
        %s32 = sadd.s32 1, %s28
      $region11: #{sgns_loss.1} parent=4 // loop_footer_branch
        %27 = sbr.rel target = $region7
      $region12: #{sgns_loss.1} parent=4 // loop_exit
        _
    $region5: #{sgns_loss.1} parent=1 // pred_fallthru
      _
    loop: start=0, step=1, limit=24
    $region21: #{sgns_loss.1} parent=1 // loop_pre_header
      _
    $region22: #{sgns_loss.1} parent=1 // loop_header
      %s64 = sphi 0, %s68
      %p65 = scmp.ge.s32.totalorder %s64, 24
    $region23: #{sgns_loss.1} parent=1 // loop_header_branch
      %67 = sbr.rel (%p65) target = $region27
    $region24: #{sgns_loss.1} parent=1 // loop_body
      %s69 = scalar_lea.sflag [#allocation4], %s20
      %71 = dma.done %s69, 16
      %s72 = scalar_lea.sflag [#allocation5], %s20
      %74 = dma.done %s72, 16
    $region25: #{sgns_loss.1} parent=1 // loop_footer
      %s68 = sadd.s32 1, %s64
    $region26: #{sgns_loss.1} parent=1 // loop_footer_branch
      %63 = sbr.rel target = $region22
    $region27: #{sgns_loss.1} parent=1 // loop_exit
      _
    %s75 = sadd.s32 0, 1
    %p76 = scmp.lt.s32.totalorder %s75, 1
    // Predicated region
    $region28: #{sgns_loss.1} parent=1 // pred_check
      %p77 = pneg %p76
    $region29: #{sgns_loss.1} parent=1 // pred_check_branch
      %79 = sbr.rel (%p77) target = $region31
    $region30: #{sgns_loss.1} parent=1 // pred_region
      %s80 = sand.u32 %s75, 1
      %s81 = smul.u32 %s75, 24
      loop: start=0, step=1, limit=24
      $region32: #{sgns_loss.1} parent=30 // loop_pre_header
        _
      $region33: #{sgns_loss.1} parent=30 // loop_header
        %s83 = sphi 0, %s87
        %p84 = scmp.ge.s32.totalorder %s83, 24
      $region34: #{sgns_loss.1} parent=30 // loop_header_branch
        %86 = sbr.rel (%p84) target = $region38
      $region35: #{sgns_loss.1} parent=30 // loop_body
        %s88 = sadd.s32 %s81, %s83
        %s89 = sld [smem:[#allocation7 + %s88]]
        %s90 = sld [smem:[#allocation8 + %s88]]
        %s91 = smul.addr %s89, 16
        %s92 = scalar_lea.hbm %s2, %s91
        %s93 = smul.u32 %s80, 24
        %s94 = sadd.s32 %s83, %s93
        %s95 = scalar_lea.vmem [#allocation2], %s94
        %s96 = scalar_lea.sflag [#allocation4], %s80
        // Predicated region
        $region39: #{sgns_loss.1} parent=35 // pred_check
          _
        $region40: #{sgns_loss.1} parent=35 // pred_check_branch
          %98 = sbr.rel target = $region42
        $region41: #{sgns_loss.1} parent=35 // pred_region
          %99 = sst [smem:[#allocation13]] [#allocation18]
          %100 = sst [smem:[#allocation14]] [#allocation17]
        $region42: #{sgns_loss.1} parent=35 // pred_fallthru
          _
        %102 = shalt.err (0)
        %s104 = sshll.u32 %s95, 4
        %s105 = int_to_ptr.vmem [resolvable:$true] %s104
        %107 = dma.hbm_to_vmem [thread:$0]  %s92, 16, %s105, %s96
        %s108 = smul.addr %s90, 16
        %s109 = scalar_lea.hbm %s3, %s108
        %s110 = scalar_lea.vmem [#allocation3], %s94
        %s111 = scalar_lea.sflag [#allocation5], %s80
        // Predicated region
        $region43: #{sgns_loss.1} parent=35 // pred_check
          _
        $region44: #{sgns_loss.1} parent=35 // pred_check_branch
          %113 = sbr.rel target = $region46
        $region45: #{sgns_loss.1} parent=35 // pred_region
          %114 = sst [smem:[#allocation13]] [#allocation20]
          %115 = sst [smem:[#allocation14]] [#allocation19]
        $region46: #{sgns_loss.1} parent=35 // pred_fallthru
          _
        %117 = shalt.err (0)
        %s119 = sshll.u32 %s110, 4
        %s120 = int_to_ptr.vmem [resolvable:$true] %s119
        %122 = dma.hbm_to_vmem [thread:$0]  %s109, 16, %s120, %s111
      $region36: #{sgns_loss.1} parent=30 // loop_footer
        %s87 = sadd.s32 1, %s83
      $region37: #{sgns_loss.1} parent=30 // loop_footer_branch
        %82 = sbr.rel target = $region33
      $region38: #{sgns_loss.1} parent=30 // loop_exit
        _
    $region31: #{sgns_loss.1} parent=1 // pred_fallthru
      _
    %s123 = smul.u32 %s20, 24
    %s124 = scalar_lea.vmem [#allocation2], %s123
    %v125 = vld [vmem:[%s124] sm:$0xff]
    %v126 = vld [vmem:[%s124 + $0x8] sm:$0xff]
    %v127 = vld [vmem:[%s124 + $0x10] sm:$0xff]
    %s128 = scalar_lea.vmem [#allocation3], %s123
    %v129 = vld [vmem:[%s128] sm:$0xff]
    %v130 = vld [vmem:[%s128 + $0x8] sm:$0xff]
    %v131 = vld [vmem:[%s128 + $0x10] sm:$0xff]
    %v132 = vmul.f32 %v125, %v129
    %v133 = vmul.f32 %v126, %v130
    %v134 = vmul.f32 %v127, %v131
    %135 = vadd.xlane.f32.xlu0 %v132
    %v136 = vpop.xlane.xlu0 %135
    %137 = vadd.xlane.f32.xlu0 %v133
    %v138 = vpop.xlane.xlu0 %137
    %139 = vadd.xlane.f32.xlu0 %v134
    %v140 = vpop.xlane.xlu0 %139
    %s141 = smul.u32 0, 24
    %v142 = vlaneseq
    %v143 = vshrl.u32 %v142, 7
    %v144 = vadd.s32 %v143, 8
    %v145 = vadd.s32 %v143, 16
    %v146 = vstv %s141
    %v147 = vadd.s32 %v146, %v143
    %v148 = vadd.s32 %v146, %v144
    %v149 = vadd.s32 %v146, %v145
    %vm150 = vcmp.lt.s32.totalorder %v147, 8
    %vm151 = vcmp.lt.s32.totalorder %v148, 8
    %vm152 = vcmp.lt.s32.totalorder %v149, 8
    %v153 = vsel %vm150, 1.0, -1.0
    %v154 = vsel %vm151, 1.0, -1.0
    %v155 = vsel %vm152, 1.0, -1.0
    %vm156 = vcmp.lt.s32.totalorder %v147, 24
    %vm157 = vcmp.lt.s32.totalorder %v148, 24
    %vm158 = vcmp.lt.s32.totalorder %v149, 24
    %v159 = vsel %vm156, 1, 0
    %v160 = vsel %vm157, 1, 0
    %v161 = vsel %vm158, 1, 0
    %v162 = vcvt.s32.f32 %v159
    %v163 = vcvt.s32.f32 %v160
    %v164 = vcvt.s32.f32 %v161
    %v165 = vmul.f32 %v153, %v136
    %v166 = vmul.f32 %v154, %v138
    %v167 = vmul.f32 %v155, %v140
    %v168 = vmin.f32 %v165, 0.0
    %v169 = vmin.f32 %v166, 0.0
    %v170 = vmin.f32 %v167, 0.0
    %v171 = vand.u32 2147483647, %v165
    %v172 = vand.u32 2147483647, %v166
    %v173 = vand.u32 2147483647, %v167
    %v174 = vsub.f32 0.0, %v171
    %v175 = vsub.f32 0.0, %v172
    %v176 = vsub.f32 0.0, %v173
    %v177 = vmul.f32 %v174, 1.442695
    %v178 = vpow.pop %v177
    %v179 = vmul.f32 %v175, 1.442695
    %v180 = vpow.pop %v179
    %v181 = vmul.f32 %v176, 1.442695
    %v182 = vpow.pop %v181
    %v183 = vadd.f32 %v178, 1.0
    %v184 = vlog2.pop %v183
    %v185 = vmul.f32 %v184, 0.6931472
    %v186 = vmul.f32 -0.5, %v178
    %v187 = vadd.f32 %v186, 1.0
    %v188 = vmul.f32 %v187, %v178
    %v189 = vand.u32 2147483647, %v178
    %vm190 = vcmp.lt.f32.partialorder %v189, 0.0004427343
    %v191 = vsel %vm190, %v188, %v185
    %v192 = vadd.f32 %v180, 1.0
    %v193 = vlog2.pop %v192
    %v194 = vmul.f32 %v193, 0.6931472
    %v195 = vmul.f32 -0.5, %v180
    %v196 = vadd.f32 %v195, 1.0
    %v197 = vmul.f32 %v196, %v180
    %v198 = vand.u32 2147483647, %v180
    %vm199 = vcmp.lt.f32.partialorder %v198, 0.0004427343
    %v200 = vsel %vm199, %v197, %v194
    %v201 = vadd.f32 %v182, 1.0
    %v202 = vlog2.pop %v201
    %v203 = vmul.f32 %v202, 0.6931472
    %v204 = vmul.f32 -0.5, %v182
    %v205 = vadd.f32 %v204, 1.0
    %v206 = vmul.f32 %v205, %v182
    %v207 = vand.u32 2147483647, %v182
    %vm208 = vcmp.lt.f32.partialorder %v207, 0.0004427343
    %v209 = vsel %vm208, %v206, %v203
    %v210 = vsub.f32 %v168, %v191
    %v211 = vsub.f32 %v169, %v200
    %v212 = vsub.f32 %v170, %v209
    %v213 = vmul.f32 %v162, %v210
    %v214 = vmul.f32 %v163, %v211
    %v215 = vmul.f32 %v164, %v212
    %v216 = vld [vmem:[#allocation9] sm:$0x1]
    %vm217 = vcmask 7168
    %v218 = vsel %vm217, %v213, 0.0
    %v219 = vsel %vm217, %v214, 0.0
    %v220 = vadd.f32 %v218, %v219
    %v221 = vsel %vm217, %v215, 0.0
    %v222 = vadd.f32 %v220, %v221
    %223 = vadd.xlane.f32.xlu0 %v222
    %v224 = vpop.xlane.xlu0 %223
    %v225 = vrot.slane %v224, 4
    %v226 = vadd.f32 %v224, %v225
    %v227 = vrot.slane %v226, 2
    %v228 = vadd.f32 %v226, %v227
    %v229 = vrot.slane %v228, 1
    %v230 = vadd.f32 %v228, %v229
    %s231 = vtos %v230
    %v232 = vstv %s231
    %v233 = vsub.f32 %v216, %v232
    %vm234 = vcmask 0
    %235 = vst.msk [vmem:[#allocation9] sm:$0x1] %vm234, %v233
    // Predicated region
    $region47: #{sgns_loss.1} parent=1 // pred_check
      _
    $region48: #{sgns_loss.1} parent=1 // pred_check_branch
      %237 = sbr.rel (0) target = $region50
    $region49: #{sgns_loss.1} parent=1 // pred_region
      %s239 = ssub.s32 16, 16
      %240 = vsyncadd [#allocation10], %s239
      %s242 = sshll.u32 [#allocation9], 4
      %s243 = int_to_ptr.vmem [resolvable:$true] %s242
      %245 = dma.vmem_to_hbm [thread:$0]  %s243, 16, %s4, [#allocation10]
    $region50: #{sgns_loss.1} parent=1 // pred_fallthru
      _
    // Predicated region
    $region51: #{sgns_loss.1} parent=1 // pred_check
      _
    $region52: #{sgns_loss.1} parent=1 // pred_check_branch
      %247 = sbr.rel (0) target = $region54
    $region53: #{sgns_loss.1} parent=1 // pred_region
      %248 = dma.done [#allocation10], 16
    $region54: #{sgns_loss.1} parent=1 // pred_fallthru
      _
    %249 = vsyncpa [#allocation10], 1
  %250 = vsyncmov [#allocation4]
  %s251 = vpop.sfrf %250
  %p252 = scmp.eq.s32.totalorder %s251, 0
  %p253 = pneg %p252
  %255 = shalt.err (%p253)
  %s256 = scalar_lea.sflag [#allocation4], 1
  %257 = vsyncmov %s256
  %s258 = vpop.sfrf %257
  %p259 = scmp.eq.s32.totalorder %s258, 0
  %p260 = pneg %p259
  %262 = shalt.err (%p260)
  %263 = vsyncmov [#allocation5]
  %s264 = vpop.sfrf %263
  %p265 = scmp.eq.s32.totalorder %s264, 0
  %p266 = pneg %p265
  %268 = shalt.err (%p266)
  %s269 = scalar_lea.sflag [#allocation5], 1
  %270 = vsyncmov %s269
  %s271 = vpop.sfrf %270
  %p272 = scmp.eq.s32.totalorder %s271, 0
  %p273 = pneg %p272
  %275 = shalt.err (%p273)

</llo_original>
